<compile_context>
chip_gen: v5e
topology: v5e:2x2
jax: 0.10.0
libtpu: 0.0.40
codegen_flags: <defaults>
</compile_context>

<pallas_src>
import functools
from typing import NamedTuple

import numpy as np

import jax
import jax.numpy as jnp
from jax.experimental import pallas as pl
from jax.experimental.pallas import tpu as pltpu


OUT_FEATURES = 84
LANE = 128


def _round_up(v, m):
    return (v + m - 1) // m * m


class Geometry(NamedTuple):
    bblk: int    # batch tile baked into the pooled left operators
    cin: int     # input channels (3)
    h: int       # input height (16)
    w: int       # input width (16)
    r_pb1: int   # offsets / shapes inside the packed "smalls" buffer
    ro1: int
    k1: int
    r_pb2: int
    ro2: int
    k2: int
    r_bias: int


# ---------------------------------------------------------------------------
# Pallas kernel: whole forward pass fused, everything resident in VMEM.
# ---------------------------------------------------------------------------
def _fused_kernel(g: Geometry, x_ref, t1_ref, t2_ref, wf_ref, sm_ref, o_ref):
    bblk, cin, w = g.bblk, g.cin, g.w

    # -- unpack the packed small operands (one DMA'd buffer) -----------------
    pb1 = sm_ref[g.r_pb1:g.r_pb1 + g.ro1, 0:g.k1]          # (bblk*8, 3*bblk*16) f32
    pb2 = sm_ref[g.r_pb2:g.r_pb2 + g.ro2, 0:g.k2]          # (bblk*4, 3*bblk*8)  f32
    b1 = sm_ref[g.r_bias + 0:g.r_bias + 1, 0:LANE]         # (1, 128)
    b2 = sm_ref[g.r_bias + 1:g.r_bias + 2, 0:LANE]
    bf = sm_ref[g.r_bias + 2:g.r_bias + 3, 0:LANE]

    def pool_left(zw, pb, bias):
        # zw: (R, 3*128) f32 per-vertical-tap horizontal conv results.
        # Fold the three ky left-multiplies into ONE matmul:
        #   [pbs0|pbs1|pbs2] @ vstack(zw[:, ky*128:(ky+1)*128])
        zs = jnp.concatenate(
            [zw[:, 0:LANE], zw[:, LANE:2 * LANE], zw[:, 2 * LANE:3 * LANE]],
            axis=0)                                        # (3R, 128), sublane-aligned
        return jnp.dot(pb, zs, preferred_element_type=jnp.float32) + bias

    # -- layer 1: conv1 + pool1 ----------------------------------------------
    # x_ref is the raw NCHW batch tile reshaped to (bblk*cin, h, w): no XLA
    # transpose outside.  Per input channel, gather the per-image (h, w) tiles
    # (static first-axis indexing, sublane-aligned concat) and accumulate the
    # channel's horizontal-Toeplitz matmul.
    zw1 = None
    for c in range(cin):
        imgs = [x_ref[b * cin + c] for b in range(bblk)]   # each (h, w)
        rows_c = imgs[0] if bblk == 1 else jnp.concatenate(imgs, axis=0)  # (bblk*h, w)
        t1_c = t1_ref[c * w:(c + 1) * w, :]                # (w, 384) bf16, static slice
        d = jnp.dot(rows_c.astype(jnp.bfloat16), t1_c,
                    preferred_element_type=jnp.float32)    # (bblk*h, 384)
        zw1 = d if zw1 is None else zw1 + d
    p1 = pool_left(zw1, pb1, b1)                           # (bblk*8, 128) rows=(b,ho)

    # -- layer 2: conv2 + pool2 ----------------------------------------------
    zw2 = jnp.dot(p1.astype(jnp.bfloat16), t2_ref[...],
                  preferred_element_type=jnp.float32)      # (bblk*8, 384)
    p2 = pool_left(zw2, pb2, b2)                           # (bblk*4, 128)

    # -- fc -------------------------------------------------------------------
    # NHWC flatten is a plain reshape; wf's rows were permuted at init to match
    # PyTorch's NCHW flatten order.  Output is 128-lane dense (unmasked store);
    # the wrapper slices the first 84 columns.
    flat = p2.reshape(bblk, wf_ref.shape[0])               # (bblk, 512)
    out = jnp.dot(flat.astype(jnp.bfloat16), wf_ref[...],
                  preferred_element_type=jnp.float32) + bf  # (bblk, 128)
    o_ref[...] = out.reshape(o_ref.shape).astype(o_ref.dtype)


# ---------------------------------------------------------------------------
# Wrapper: one ("parallel",) grid axis over batch tiles.
# ---------------------------------------------------------------------------
def model_forward(x_nchw, kp, geom: Geometry):
    """x_nchw: (B, 3, 16, 16) float32 (PyTorch layout)."""
    bblk, cin, h, w = geom.bblk, geom.cin, geom.h, geom.w
    B = x_nchw.shape[0]
    nblk = -(-B // bblk)
    bp = nblk * bblk
    if bp != B:
        x_nchw = jnp.pad(x_nchw, ((0, bp - B), (0, 0), (0, 0), (0, 0)))
    x_rows = x_nchw.reshape(bp * cin, h, w)    # pure reshape, no transpose op

    kernel = functools.partial(_fused_kernel, geom)
    out = pl.pallas_call(
        kernel,
        out_shape=jax.ShapeDtypeStruct((nblk, bblk, LANE), jnp.float32),
        grid_spec=pltpu.PrefetchScalarGridSpec(
            num_scalar_prefetch=0,
            grid=(nblk,),
            in_specs=[
                pl.BlockSpec((bblk * cin, h, w), lambda i: (i, 0, 0)),  # batch tile
                pl.BlockSpec(kp["t1"].shape, lambda i: (0, 0)),         # resident params
                pl.BlockSpec(kp["t2"].shape, lambda i: (0, 0)),
                pl.BlockSpec(kp["wf"].shape, lambda i: (0, 0)),
                pl.BlockSpec(kp["smalls"].shape, lambda i: (0, 0)),
            ],
            out_specs=pl.BlockSpec((1, bblk, LANE), lambda i: (i, 0, 0)),
        ),
        compiler_params=pltpu.CompilerParams(
            dimension_semantics=("parallel",)),
    )(x_rows, kp["t1"], kp["t2"], kp["wf"], kp["smalls"])
    return out.reshape(bp, LANE)[:B, :OUT_FEATURES]


# ---------------------------------------------------------------------------
# One-time host-side folding of PyTorch-layout params into kernel operands.
# ---------------------------------------------------------------------------
def _conv_pool_right(w_oihw, w_in, in_rows_channel_major):
    """(Cin*W, 3*N): per-vertical-tap horizontal Toeplitz weights with the 2x2
    avg-pool column pairing and the 0.25 factor folded in.  N = (W//2)*Cout.
    Row order: c*W + w (channel-major) or w*Cin + c (channel-minor)."""
    wgt = np.asarray(w_oihw, np.float32)            # (Cout, Cin, 3, 3)
    cout, cin = wgt.shape[0], wgt.shape[1]
    w_out = w_in // 2
    n = w_out * cout
    t = np.zeros((cin * w_in, 3 * n), np.float32)
    for ky in range(3):
        for kx in range(3):
            tap = 0.25 * wgt[:, :, ky, kx]          # (Cout, Cin)
            for wo in range(w_out):
                for dx in range(2):
                    wi = 2 * wo + dx + kx - 1       # input col feeding conv col 2*wo+dx
                    if 0 <= wi < w_in:              # out-of-range == zero padding
                        for c in range(cin):
                            r = c * w_in + wi if in_rows_channel_major else wi * cin + c
                            t[r, ky * n + wo * cout: ky * n + (wo + 1) * cout] += tap[:, c]
    return t


def _pool_left_cat(bblk, h_in):
    """(bblk*H/2, 3*bblk*H) 0/1 matrix = hstack over ky of the vertical-tap
    shift + avg-pool row pairing + zero-pad boundary operators (per batch tile)."""
    h_out = h_in // 2
    R = bblk * h_in
    p = np.zeros((bblk * h_out, 3 * R), np.float32)
    for ky in range(3):
        for b in range(bblk):
            for ho in range(h_out):
                for dy in range(2):
                    hi = 2 * ho + dy + ky - 1
                    if 0 <= hi < h_in:
                        p[b * h_out + ho, ky * R + b * h_in + hi] += 1.0
    return p


def _fc_operands(fc_w, fc_b, h, w, c, n_pad=LANE):
    """Permute fc weight rows from PyTorch's NCHW-flatten order to the kernel's
    NHWC-flatten order, transpose to (K, N) and zero-pad N: 84 -> n_pad."""
    wf = np.asarray(fc_w, np.float32)               # (84, C*H*W)
    m = wf.shape[0]
    wk = np.zeros((h * w * c, n_pad), np.float32)
    for hh in range(h):
        for ww in range(w):
            for cc in range(c):
                k_kernel = hh * (w * c) + ww * c + cc     # NHWC flatten index
                k_torch = cc * (h * w) + hh * w + ww      # NCHW flatten index
                wk[k_kernel, :m] = wf[:, k_torch]
    bk = np.zeros((n_pad,), np.float32)
    bk[:m] = np.asarray(fc_b, np.float32)
    return wk, bk


def prepare_params(params, bblk=2, h=16, w=16):
    """Fold PyTorch-layout params into the fused kernel's constant operands.
    Only the batch TILE (bblk) is baked in; any batch size runs via the grid."""
    cin = int(params["conv1_w"].shape[1])
    c2 = int(params["conv2_w"].shape[0])

    t1 = _conv_pool_right(params["conv1_w"], w, in_rows_channel_major=True)        # (48, 384)
    t2 = _conv_pool_right(params["conv2_w"], w // 2, in_rows_channel_major=False)  # (128, 384)
    wf, bf = _fc_operands(params["fc_w"], params["fc_b"], h=h // 4, w=w // 4, c=c2)

    pb1 = _pool_left_cat(bblk, h)          # (bblk*8, 3*bblk*16)
    pb2 = _pool_left_cat(bblk, h // 2)     # (bblk*4, 3*bblk*8)
    b1 = np.tile(np.asarray(params["conv1_b"], np.float32), w // 2)   # (128,)
    b2 = np.tile(np.asarray(params["conv2_b"], np.float32), w // 4)   # (128,)

    # Pack all tiny f32 operands into ONE buffer (one DMA instead of five).
    ro1, k1 = pb1.shape
    ro2, k2 = pb2.shape
    r_pb1 = 0
    r_pb2 = _round_up(ro1, 8)
    r_bias = r_pb2 + _round_up(ro2, 8)
    rows = r_bias + 8
    width = max(LANE, _round_up(k1, LANE))
    smalls = np.zeros((rows, width), np.float32)
    smalls[r_pb1:r_pb1 + ro1, :k1] = pb1
    smalls[r_pb2:r_pb2 + ro2, :k2] = pb2
    smalls[r_bias + 0, :LANE] = b1
    smalls[r_bias + 1, :LANE] = b2
    smalls[r_bias + 2, :LANE] = bf

    kp = {
        "t1": jnp.asarray(t1, jnp.bfloat16),
        "t2": jnp.asarray(t2, jnp.bfloat16),
        "wf": jnp.asarray(wf, jnp.bfloat16),
        "smalls": jnp.asarray(smalls, jnp.float32),
    }
    geom = Geometry(bblk=bblk, cin=cin, h=h, w=w,
                    r_pb1=r_pb1, ro1=ro1, k1=k1,
                    r_pb2=r_pb2, ro2=ro2, k2=k2, r_bias=r_bias)
    return kp, geom


def init_params(key):
    """Parameters in PyTorch layout: conv OIHW, linear (out_features, in_features)."""
    ks = jax.random.split(key, 6)
    return {
        "conv1_w": jax.random.normal(ks[0], (16, 3, 3, 3), jnp.float32) * 0.1,
        "conv1_b": jax.random.normal(ks[1], (16,), jnp.float32) * 0.1,
        "conv2_w": jax.random.normal(ks[2], (32, 16, 3, 3), jnp.float32) * 0.05,
        "conv2_b": jax.random.normal(ks[3], (32,), jnp.float32) * 0.05,
        "fc_w": jax.random.normal(ks[4], (OUT_FEATURES, 32 * 4 * 4), jnp.float32) * 0.02,
        "fc_b": jax.random.normal(ks[5], (OUT_FEATURES,), jnp.float32) * 0.02,
    }


# ---------------------------------------------------------------------------
# Pure-JAX reference (matches the PyTorch module) for a sanity check.
# ---------------------------------------------------------------------------
def reference_forward(x, params):
    def conv_pool(y, wgt, b):
        y = jax.lax.conv_general_dilated(
            y, wgt, window_strides=(1, 1), padding=((1, 1), (1, 1)),
            dimension_numbers=("NCHW", "OIHW", "NCHW"))
        y = y + b[None, :, None, None]
        n, c, hh, ww = y.shape
        return y.reshape(n, c, hh // 2, 2, ww // 2, 2).mean(axis=(3, 5))

    y = conv_pool(x, params["conv1_w"], params["conv1_b"])
    y = conv_pool(y, params["conv2_w"], params["conv2_b"])
    y = y.reshape(y.shape[0], -1)
    return y @ params["fc_w"].T + params["fc_b"]


if __name__ == "__main__":
    key = jax.random.PRNGKey(0)
    pkey, xkey = jax.random.split(key)
    params = init_params(pkey)

    # Input matching the PyTorch module: (batch=2, channels=3, 16x16 spatial)
    x = jax.random.normal(xkey, (2, 3, 16, 16), jnp.float32)

    kparams, geom = prepare_params(params, bblk=2, h=x.shape[2], w=x.shape[3])

    fwd = jax.jit(model_forward, static_argnums=(2,))
    out = fwd(x, kparams, geom)
    out = jax.block_until_ready(out)

    assert out.shape == (2, OUT_FEATURES), out.shape
    assert out.dtype == jnp.float32

    # Loose tolerance: matmuls run as bf16 MXU passes (same as default f32 precision).
    ref = reference_forward(x, params)
    rel_err = float(jnp.max(jnp.abs(out - ref)) / (jnp.max(jnp.abs(ref)) + 1e-12))
    assert rel_err < 5e-2, f"kernel/reference mismatch: rel_err={rel_err:.3e}"

    print("KERNEL_OK")
</pallas_src>

<mosaic_0001>
module attributes {stable_mosaic.version = 11 : i64} {
  func.func @_fused_kernel(%arg0: i32, %arg1: memref<6x16x16xf32, #tpu.memory_space<vmem>>, %arg2: memref<48x384xbf16, #tpu.memory_space<vmem>>, %arg3: memref<128x384xbf16, #tpu.memory_space<vmem>>, %arg4: memref<512x128xbf16, #tpu.memory_space<vmem>>, %arg5: memref<32x128xf32, #tpu.memory_space<vmem>>, %arg6: memref<1x2x128xf32, #tpu.memory_space<vmem>>) attributes {dimension_semantics = [#tpu.dimension_semantics<parallel>], iteration_bounds = array<i64: 1>, scalar_prefetch = 0 : i64, scratch_operands = 0 : i64, tpu.core_type = #tpu.core_type<tc>, window_params = [{transform_indices = @transform_0, window_bounds = array<i64: 6, 16, 16>}, {pipeline_mode = #tpu.pipeline_mode<synchronous>, transform_indices = @transform_1, window_bounds = array<i64: 48, 384>}, {pipeline_mode = #tpu.pipeline_mode<synchronous>, transform_indices = @transform_2, window_bounds = array<i64: 128, 384>}, {pipeline_mode = #tpu.pipeline_mode<synchronous>, transform_indices = @transform_3, window_bounds = array<i64: 512, 128>}, {pipeline_mode = #tpu.pipeline_mode<synchronous>, transform_indices = @transform_4, window_bounds = array<i64: 32, 128>}, {transform_indices = @transform_5, window_bounds = array<i64: 1, 2, 128>}]} {
    %c0 = arith.constant 0 : index
    %c0_0 = arith.constant 0 : index
    %0 = vector.load %arg5[%c0, %c0_0] : memref<32x128xf32, #tpu.memory_space<vmem>>, vector<16x96xf32>
    %c16 = arith.constant 16 : index
    %c0_1 = arith.constant 0 : index
    %1 = vector.load %arg5[%c16, %c0_1] : memref<32x128xf32, #tpu.memory_space<vmem>>, vector<8x48xf32>
    %c24 = arith.constant 24 : index
    %c0_2 = arith.constant 0 : index
    %2 = vector.load %arg5[%c24, %c0_2] : memref<32x128xf32, #tpu.memory_space<vmem>>, vector<1x128xf32>
    %c25 = arith.constant 25 : index
    %c0_3 = arith.constant 0 : index
    %3 = vector.load %arg5[%c25, %c0_3] : memref<32x128xf32, #tpu.memory_space<vmem>>, vector<1x128xf32>
    %c26 = arith.constant 26 : index
    %c0_4 = arith.constant 0 : index
    %4 = vector.load %arg5[%c26, %c0_4] : memref<32x128xf32, #tpu.memory_space<vmem>>, vector<1x128xf32>
    %c0_5 = arith.constant 0 : index
    %c0_6 = arith.constant 0 : index
    %c0_7 = arith.constant 0 : index
    %5 = vector.load %arg1[%c0_5, %c0_6, %c0_7] : memref<6x16x16xf32, #tpu.memory_space<vmem>>, vector<1x16x16xf32>
    %6 = vector.shape_cast %5 : vector<1x16x16xf32> to vector<16x16xf32>
    %c3 = arith.constant 3 : index
    %c0_8 = arith.constant 0 : index
    %c0_9 = arith.constant 0 : index
    %7 = vector.load %arg1[%c3, %c0_8, %c0_9] : memref<6x16x16xf32, #tpu.memory_space<vmem>>, vector<1x16x16xf32>
    %8 = vector.shape_cast %7 : vector<1x16x16xf32> to vector<16x16xf32>
    %9 = tpu.concatenate %6, %8 in 0 : vector<16x16xf32>, vector<16x16xf32> -> vector<32x16xf32>
    %c0_10 = arith.constant 0 : index
    %c0_11 = arith.constant 0 : index
    %10 = vector.load %arg2[%c0_10, %c0_11] : memref<48x384xbf16, #tpu.memory_space<vmem>>, vector<16x384xbf16>
    %11 = arith.truncf %9 : vector<32x16xf32> to vector<32x16xbf16>
    %cst = arith.constant dense<0.000000e+00> : vector<32x384xf32>
    %12 = tpu.matmul %11, %10, %cst {dimension_numbers = #tpu.dot_dimension_numbers<[1], [0], [0], [1], [0, 0, 1, 1], [], []>} : vector<32x16xbf16>, vector<16x384xbf16>, vector<32x384xf32> -> vector<32x384xf32>
    %c1 = arith.constant 1 : index
    %c0_12 = arith.constant 0 : index
    %c0_13 = arith.constant 0 : index
    %13 = vector.load %arg1[%c1, %c0_12, %c0_13] : memref<6x16x16xf32, #tpu.memory_space<vmem>>, vector<1x16x16xf32>
    %14 = vector.shape_cast %13 : vector<1x16x16xf32> to vector<16x16xf32>
    %c4 = arith.constant 4 : index
    %c0_14 = arith.constant 0 : index
    %c0_15 = arith.constant 0 : index
    %15 = vector.load %arg1[%c4, %c0_14, %c0_15] : memref<6x16x16xf32, #tpu.memory_space<vmem>>, vector<1x16x16xf32>
    %16 = vector.shape_cast %15 : vector<1x16x16xf32> to vector<16x16xf32>
    %17 = tpu.concatenate %14, %16 in 0 : vector<16x16xf32>, vector<16x16xf32> -> vector<32x16xf32>
    %c16_16 = arith.constant 16 : index
    %c0_17 = arith.constant 0 : index
    %18 = vector.load %arg2[%c16_16, %c0_17] : memref<48x384xbf16, #tpu.memory_space<vmem>>, vector<16x384xbf16>
    %19 = arith.truncf %17 : vector<32x16xf32> to vector<32x16xbf16>
    %cst_18 = arith.constant dense<0.000000e+00> : vector<32x384xf32>
    %20 = tpu.matmul %19, %18, %cst_18 {dimension_numbers = #tpu.dot_dimension_numbers<[1], [0], [0], [1], [0, 0, 1, 1], [], []>} : vector<32x16xbf16>, vector<16x384xbf16>, vector<32x384xf32> -> vector<32x384xf32>
    %21 = arith.addf %12, %20 : vector<32x384xf32>
    %c2 = arith.constant 2 : index
    %c0_19 = arith.constant 0 : index
    %c0_20 = arith.constant 0 : index
    %22 = vector.load %arg1[%c2, %c0_19, %c0_20] : memref<6x16x16xf32, #tpu.memory_space<vmem>>, vector<1x16x16xf32>
    %23 = vector.shape_cast %22 : vector<1x16x16xf32> to vector<16x16xf32>
    %c5 = arith.constant 5 : index
    %c0_21 = arith.constant 0 : index
    %c0_22 = arith.constant 0 : index
    %24 = vector.load %arg1[%c5, %c0_21, %c0_22] : memref<6x16x16xf32, #tpu.memory_space<vmem>>, vector<1x16x16xf32>
    %25 = vector.shape_cast %24 : vector<1x16x16xf32> to vector<16x16xf32>
    %26 = tpu.concatenate %23, %25 in 0 : vector<16x16xf32>, vector<16x16xf32> -> vector<32x16xf32>
    %c32 = arith.constant 32 : index
    %c0_23 = arith.constant 0 : index
    %27 = vector.load %arg2[%c32, %c0_23] : memref<48x384xbf16, #tpu.memory_space<vmem>>, vector<16x384xbf16>
    %28 = arith.truncf %26 : vector<32x16xf32> to vector<32x16xbf16>
    %cst_24 = arith.constant dense<0.000000e+00> : vector<32x384xf32>
    %29 = tpu.matmul %28, %27, %cst_24 {dimension_numbers = #tpu.dot_dimension_numbers<[1], [0], [0], [1], [0, 0, 1, 1], [], []>} : vector<32x16xbf16>, vector<16x384xbf16>, vector<32x384xf32> -> vector<32x384xf32>
    %30 = arith.addf %21, %29 : vector<32x384xf32>
    %31 = vector.extract_strided_slice %30 {offsets = [0, 0], sizes = [32, 128], strides = [1, 1]} : vector<32x384xf32> to vector<32x128xf32>
    %32 = vector.extract_strided_slice %30 {offsets = [0, 128], sizes = [32, 128], strides = [1, 1]} : vector<32x384xf32> to vector<32x128xf32>
    %33 = vector.extract_strided_slice %30 {offsets = [0, 256], sizes = [32, 128], strides = [1, 1]} : vector<32x384xf32> to vector<32x128xf32>
    %34 = tpu.concatenate %31, %32, %33 in 0 : vector<32x128xf32>, vector<32x128xf32>, vector<32x128xf32> -> vector<96x128xf32>
    %cst_25 = arith.constant dense<0.000000e+00> : vector<16x128xf32>
    %35 = tpu.matmul %0, %34, %cst_25 {dimension_numbers = #tpu.dot_dimension_numbers<[1], [0], [0], [1], [0, 0, 1, 1], [], []>} : vector<16x96xf32>, vector<96x128xf32>, vector<16x128xf32> -> vector<16x128xf32>
    %36 = vector.broadcast %2 : vector<1x128xf32> to vector<16x128xf32>
    %37 = arith.addf %35, %36 : vector<16x128xf32>
    %38 = arith.truncf %37 : vector<16x128xf32> to vector<16x128xbf16>
    %c0_26 = arith.constant 0 : index
    %c0_27 = arith.constant 0 : index
    %39 = vector.load %arg3[%c0_26, %c0_27] : memref<128x384xbf16, #tpu.memory_space<vmem>>, vector<128x384xbf16>
    %cst_28 = arith.constant dense<0.000000e+00> : vector<16x384xf32>
    %40 = tpu.matmul %38, %39, %cst_28 {dimension_numbers = #tpu.dot_dimension_numbers<[1], [0], [0], [1], [0, 0, 1, 1], [], []>} : vector<16x128xbf16>, vector<128x384xbf16>, vector<16x384xf32> -> vector<16x384xf32>
    %41 = vector.extract_strided_slice %40 {offsets = [0, 0], sizes = [16, 128], strides = [1, 1]} : vector<16x384xf32> to vector<16x128xf32>
    %42 = vector.extract_strided_slice %40 {offsets = [0, 128], sizes = [16, 128], strides = [1, 1]} : vector<16x384xf32> to vector<16x128xf32>
    %43 = vector.extract_strided_slice %40 {offsets = [0, 256], sizes = [16, 128], strides = [1, 1]} : vector<16x384xf32> to vector<16x128xf32>
    %44 = tpu.concatenate %41, %42, %43 in 0 : vector<16x128xf32>, vector<16x128xf32>, vector<16x128xf32> -> vector<48x128xf32>
    %cst_29 = arith.constant dense<0.000000e+00> : vector<8x128xf32>
    %45 = tpu.matmul %1, %44, %cst_29 {dimension_numbers = #tpu.dot_dimension_numbers<[1], [0], [0], [1], [0, 0, 1, 1], [], []>} : vector<8x48xf32>, vector<48x128xf32>, vector<8x128xf32> -> vector<8x128xf32>
    %46 = vector.broadcast %3 : vector<1x128xf32> to vector<8x128xf32>
    %47 = arith.addf %45, %46 : vector<8x128xf32>
    %48 = vector.shape_cast %47 : vector<8x128xf32> to vector<2x512xf32>
    %49 = arith.truncf %48 : vector<2x512xf32> to vector<2x512xbf16>
    %c0_30 = arith.constant 0 : index
    %c0_31 = arith.constant 0 : index
    %50 = vector.load %arg4[%c0_30, %c0_31] : memref<512x128xbf16, #tpu.memory_space<vmem>>, vector<512x128xbf16>
    %cst_32 = arith.constant dense<0.000000e+00> : vector<2x128xf32>
    %51 = tpu.matmul %49, %50, %cst_32 {dimension_numbers = #tpu.dot_dimension_numbers<[1], [0], [0], [1], [0, 0, 1, 1], [], []>} : vector<2x512xbf16>, vector<512x128xbf16>, vector<2x128xf32> -> vector<2x128xf32>
    %52 = vector.broadcast %4 : vector<1x128xf32> to vector<2x128xf32>
    %53 = arith.addf %51, %52 : vector<2x128xf32>
    %54 = vector.shape_cast %53 : vector<2x128xf32> to vector<1x2x128xf32>
    %c0_33 = arith.constant 0 : index
    %c0_34 = arith.constant 0 : index
    %c0_35 = arith.constant 0 : index
    %55 = vector.load %arg6[%c0_33, %c0_34, %c0_35] : memref<1x2x128xf32, #tpu.memory_space<vmem>>, vector<1x2x128xf32>
    tpu.vector_store %arg6[%c0_33, %c0_34, %c0_35], %54 {strides = array<i32>} : memref<1x2x128xf32, #tpu.memory_space<vmem>>, vector<1x2x128xf32>,
    return
  }
  func.func @transform_0(%arg0: i32) -> (i32, i32, i32) {
    %c0_i32 = arith.constant 0 : i32
    %c0_i32_0 = arith.constant 0 : i32
    %c0_i32_1 = arith.constant 0 : i32
    return %arg0, %c0_i32, %c0_i32_0 : i32, i32, i32
  }
  func.func @transform_1(%arg0: i32) -> (i32, i32) {
    %c0_i32 = arith.constant 0 : i32
    %c0_i32_0 = arith.constant 0 : i32
    %c0_i32_1 = arith.constant 0 : i32
    return %c0_i32, %c0_i32_0 : i32, i32
  }
  func.func @transform_2(%arg0: i32) -> (i32, i32) {
    %c0_i32 = arith.constant 0 : i32
    %c0_i32_0 = arith.constant 0 : i32
    %c0_i32_1 = arith.constant 0 : i32
    return %c0_i32, %c0_i32_0 : i32, i32
  }
  func.func @transform_3(%arg0: i32) -> (i32, i32) {
    %c0_i32 = arith.constant 0 : i32
    %c0_i32_0 = arith.constant 0 : i32
    %c0_i32_1 = arith.constant 0 : i32
    return %c0_i32, %c0_i32_0 : i32, i32
  }
  func.func @transform_4(%arg0: i32) -> (i32, i32) {
    %c0_i32 = arith.constant 0 : i32
    %c0_i32_0 = arith.constant 0 : i32
    %c0_i32_1 = arith.constant 0 : i32
    return %c0_i32, %c0_i32_0 : i32, i32
  }
  func.func @transform_5(%arg0: i32) -> (i32, i32, i32) {
    %c0_i32 = arith.constant 0 : i32
    %c0_i32_0 = arith.constant 0 : i32
    %c0_i32_1 = arith.constant 0 : i32
    return %arg0, %c0_i32, %c0_i32_0 : i32, i32, i32
  }
}

</mosaic_0001>

<llo_original>
// kernel: model_forward.1
$region0: #{model_forward.1}
  #allocation0 [shape = 'u32[]', space=smem, size = 0x4, offset = 0x4, fixed_abs, tag = 'smem constant byte address 0x4 - core index']
  #allocation1 [shape = 'u32[72,128]{1,0:T(1,128)}', space=vmem, size = 0x9000, scoped, tag = 'internal scratch']
  %s0 = inlined_call_operand.hbm [shape: f32[6,16,16], index: 0, kind: input, shape index: {}]
  %s1 = inlined_call_operand.hbm [shape: bf16[48,384], index: 1, kind: input, shape index: {}]
  %s2 = inlined_call_operand.hbm [shape: bf16[128,384], index: 2, kind: input, shape index: {}]
  %s3 = inlined_call_operand.hbm [shape: bf16[512,128], index: 3, kind: input, shape index: {}]
  %s4 = inlined_call_operand.hbm [shape: f32[32,128], index: 4, kind: input, shape index: {}]
  %s5 = inlined_call_operand.hbm [shape: f32[1,2,128], index: 5, kind: output, shape index: {}]
  %s6 = sld [smem:[#allocation0]]
  $region50: #{model_forward.1} parent=0
    _
  %s8 = ssub.s32 1, %s6
  %s9 = scalar_select 0, %s8, %s6
  $region1: #{model_forward.1} parent=0
    #allocation2 [shape = 'u8[49152]{0}', space=vmem, size = 0xc000, scoped, tag = 'input window, operand 0, single buffered']
    #allocation3 [shape = 's32[1]{0}', space=sflag, size = 0x4, scoped, tag = 'scoped memory for model_forward.1']
    #allocation4 [shape = 's32[1]{0}', space=sflag, size = 0x4, scoped, tag = 'scoped memory for model_forward.1']
    #allocation5 [shape = 'u8[36864]{0}', space=vmem, size = 0x9000, scoped, tag = 'input window, operand 1, single buffered']
    #allocation6 [shape = 's32[1]{0}', space=sflag, size = 0x4, scoped, tag = 'scoped memory for model_forward.1']
    #allocation7 [shape = 'u8[98304]{0}', space=vmem, size = 0x18000, scoped, tag = 'input window, operand 2, single buffered']
    #allocation8 [shape = 'u8[131072]{0}', space=vmem, size = 0x20000, scoped, tag = 'input window, operand 3, single buffered']
    #allocation9 [shape = 's32[1]{0}', space=sflag, size = 0x4, scoped, tag = 'scoped memory for model_forward.1']
    #allocation10 [shape = 'u8[16384]{0}', space=vmem, size = 0x4000, scoped, tag = 'input window, operand 4, single buffered']
    #allocation11 [shape = 'u8[1024]{0}', space=vmem, size = 0x400, scoped, tag = 'output window, operand 0, single buffered']
    %10 = vsyncpa [#allocation3], 0
    %11 = vsyncpa [#allocation6], 0
    %12 = vsyncpa [#allocation9], 0
    %13 = vsyncpa [#allocation4], 0
    // Predicated region
    $region2: #{model_forward.1} parent=1 // pred_check
      _
    $region3: #{model_forward.1} parent=1 // pred_check_branch
      %15 = sbr.rel (0) target = $region5
    $region4: #{model_forward.1} parent=1 // pred_region
      %17 = vsyncadd [#allocation3], 0
      %s18 = sshll.u32 %s0, 4
      %s19 = int_to_ptr.hbm [resolvable:$true] %s18
      %s20 = sshll.u32 [#allocation2], 4
      %s21 = int_to_ptr.vmem [resolvable:$true] %s20
      %26 = dma.hbm_to_vmem [thread:$0]  %s19, 1536, %s21, [#allocation3], 128, 128, 8
    $region5: #{model_forward.1} parent=1 // pred_fallthru
      _
    // Predicated region
    $region6: #{model_forward.1} parent=1 // pred_check
      _
    $region7: #{model_forward.1} parent=1 // pred_check_branch
      %28 = sbr.rel (0) target = $region9
    $region8: #{model_forward.1} parent=1 // pred_region
      %30 = vsyncadd [#allocation6], 0
      %s31 = sshll.u32 %s1, 4
      %s32 = int_to_ptr.hbm [resolvable:$true] %s31
      %s33 = sshll.u32 [#allocation5], 4
      %s34 = int_to_ptr.vmem [resolvable:$true] %s33
      %39 = dma.hbm_to_vmem [thread:$0]  %s32, 1152, %s34, [#allocation6], 192, 192, 12
    $region9: #{model_forward.1} parent=1 // pred_fallthru
      _
    // Predicated region
    $region10: #{model_forward.1} parent=1 // pred_check
      _
    $region11: #{model_forward.1} parent=1 // pred_check_branch
      %41 = sbr.rel (0) target = $region13
    $region12: #{model_forward.1} parent=1 // pred_region
      %43 = vsyncadd [#allocation6], 0
      %s44 = sshll.u32 %s2, 4
      %s45 = int_to_ptr.hbm [resolvable:$true] %s44
      %s46 = sshll.u32 [#allocation7], 4
      %s47 = int_to_ptr.vmem [resolvable:$true] %s46
      %52 = dma.hbm_to_vmem [thread:$0]  %s45, 3072, %s47, [#allocation6], 192, 192, 12
    $region13: #{model_forward.1} parent=1 // pred_fallthru
      _
    // Predicated region
    $region14: #{model_forward.1} parent=1 // pred_check
      _
    $region15: #{model_forward.1} parent=1 // pred_check_branch
      %54 = sbr.rel (0) target = $region17
    $region16: #{model_forward.1} parent=1 // pred_region
      %56 = vsyncadd [#allocation9], 0
      %s57 = sshll.u32 %s3, 4
      %s58 = int_to_ptr.hbm [resolvable:$true] %s57
      %s59 = sshll.u32 [#allocation8], 4
      %s60 = int_to_ptr.vmem [resolvable:$true] %s59
      %65 = dma.hbm_to_vmem [thread:$0]  %s58, 4096, %s60, [#allocation9], 64, 64, 4
    $region17: #{model_forward.1} parent=1 // pred_fallthru
      _
    // Predicated region
    $region18: #{model_forward.1} parent=1 // pred_check
      _
    $region19: #{model_forward.1} parent=1 // pred_check_branch
      %67 = sbr.rel (0) target = $region21
    $region20: #{model_forward.1} parent=1 // pred_region
      %69 = vsyncadd [#allocation9], 0
      %s70 = sshll.u32 %s4, 4
      %s71 = int_to_ptr.hbm [resolvable:$true] %s70
      %s72 = sshll.u32 [#allocation10], 4
      %s73 = int_to_ptr.vmem [resolvable:$true] %s72
      %78 = dma.hbm_to_vmem [thread:$0]  %s71, 512, %s73, [#allocation9], 128, 128, 8
    $region21: #{model_forward.1} parent=1 // pred_fallthru
      _
    // Predicated region
    $region22: #{model_forward.1} parent=1 // pred_check
      _
    $region23: #{model_forward.1} parent=1 // pred_check_branch
      %80 = sbr.rel (0) target = $region25
    $region24: #{model_forward.1} parent=1 // pred_region
      %82 = dma.done [#allocation3], 1536
    $region25: #{model_forward.1} parent=1 // pred_fallthru
      _
    // Predicated region
    $region26: #{model_forward.1} parent=1 // pred_check
      _
    $region27: #{model_forward.1} parent=1 // pred_check_branch
      %84 = sbr.rel (0) target = $region29
    $region28: #{model_forward.1} parent=1 // pred_region
      %86 = dma.done [#allocation6], 1152
    $region29: #{model_forward.1} parent=1 // pred_fallthru
      _
    // Predicated region
    $region30: #{model_forward.1} parent=1 // pred_check
      _
    $region31: #{model_forward.1} parent=1 // pred_check_branch
      %88 = sbr.rel (0) target = $region33
    $region32: #{model_forward.1} parent=1 // pred_region
      %90 = dma.done [#allocation6], 3072
    $region33: #{model_forward.1} parent=1 // pred_fallthru
      _
    // Predicated region
    $region34: #{model_forward.1} parent=1 // pred_check
      _
    $region35: #{model_forward.1} parent=1 // pred_check_branch
      %92 = sbr.rel (0) target = $region37
    $region36: #{model_forward.1} parent=1 // pred_region
      %94 = dma.done [#allocation9], 4096
    $region37: #{model_forward.1} parent=1 // pred_fallthru
      _
    // Predicated region
    $region38: #{model_forward.1} parent=1 // pred_check
      _
    $region39: #{model_forward.1} parent=1 // pred_check_branch
      %96 = sbr.rel (0) target = $region41
    $region40: #{model_forward.1} parent=1 // pred_region
      %98 = dma.done [#allocation9], 512
    $region41: #{model_forward.1} parent=1 // pred_fallthru
      _
    %v100 = vld [vmem:[#allocation10] sm:$0xff]
    %v101 = vld [vmem:[#allocation10 + $0x8] sm:$0xff]
    %v102 = vld [vmem:[#allocation10 + $0x10] sm:$0xff]
    %v103 = vld [vmem:[#allocation10 + $0x18] sm:$0x1]
    %v104 = vld [vmem:[#allocation10 + $0x19] sm:$0x1]
    %v105 = vld [vmem:[#allocation10 + $0x1a] sm:$0x1]
    %v106 = vld [vmem:[#allocation2] sm:$0xff]
    %v107 = vld [vmem:[#allocation2 + $0x8] sm:$0xff]
    %s108 = scalar_lea.vmem [#allocation2], 48
    %v109 = vld [vmem:[%s108] sm:$0xff]
    %v110 = vld [vmem:[%s108 + $0x8] sm:$0xff]
    %v111 = vld [vmem:[#allocation5] sm:$0xff]
    %v112 = vld [vmem:[#allocation5 + $0x8] sm:$0xf]
    %v113 = vld [vmem:[#allocation5 + $0xc] sm:$0xff]
    %v114 = vld [vmem:[#allocation5 + $0x14] sm:$0xf]
    %v115 = vpack.c.bf16 %v107, %v106
    %v116 = vpack.c.bf16 %v110, %v109
    %s117 = scalar_lea.vmem [#allocation2], 16
    %v118 = vld [vmem:[%s117] sm:$0xff]
    %v119 = vld [vmem:[%s117 + $0x8] sm:$0xff]
    %s120 = scalar_lea.vmem [#allocation2], 64
    %v121 = vld [vmem:[%s120] sm:$0xff]
    %v122 = vld [vmem:[%s120 + $0x8] sm:$0xff]
    %v123 = vld [vmem:[#allocation5 + $0x18] sm:$0xff]
    %v124 = vld [vmem:[#allocation5 + $0x20] sm:$0xf]
    %v125 = vld [vmem:[#allocation5 + $0x24] sm:$0xff]
    %v126 = vld [vmem:[#allocation5 + $0x2c] sm:$0xf]
    %v127 = vpack.c.bf16 %v119, %v118
    %v128 = vpack.c.bf16 %v122, %v121
    %v133 = vunpack.c.l.b16 %v123
    %v134 = vunpack.c.h.b16 %v123
    %v135 = vunpack.c.l.b16 %v124
    %v136 = vunpack.c.l.b16 %v125
    %v137 = vunpack.c.h.b16 %v125
    %v138 = vunpack.c.l.b16 %v126
    %v139 = vpack.c.b16 %v136, %v133
    %v140 = vpack.c.b16 %v137, %v134
    %v141 = vpack.c.b16 %v138, %v135
    %vm145 = vcmask 130048
    %v147 = vsel %vm145, %v127, 0
    %v150 = vsel %vm145, %v128, 0
    %152 = vmatpush.bf16.msra.mxu0 0
    %153 = vmatpush.bf16.msra.mxu0 0
    %154 = vmatpush.bf16.msra.mxu0 0
    %155 = vmatpush.bf16.msra.mxu0 0
    %156 = vmatpush.bf16.msra.mxu0 0
    %157 = vmatpush.bf16.msra.mxu0 0
    %158 = vmatpush.bf16.msra.mxu0 0
    %159 = vmatpush.bf16.msra.mxu0 %v139
    %160 = vmatmul.bf16.gmra.mxu0 %v147
    %v161 = vpop.f32.mrf.mxu0
    %v162 = vadd.f32 0.0, %v161
    %v163 = vpop.f32.mrf.mxu0
    %v164 = vadd.f32 0.0, %v163
    %165 = vmatmul.bf16.gmra.mxu0 %v150
    %v166 = vpop.f32.mrf.mxu0
    %v167 = vadd.f32 0.0, %v166
    %v168 = vpop.f32.mrf.mxu0
    %v169 = vadd.f32 0.0, %v168
    %170 = vdwg.mxu0
    %171 = vmatpush.bf16.msra.mxu0 0
    %172 = vmatpush.bf16.msra.mxu0 0
    %173 = vmatpush.bf16.msra.mxu0 0
    %174 = vmatpush.bf16.msra.mxu0 0
    %175 = vmatpush.bf16.msra.mxu0 0
    %176 = vmatpush.bf16.msra.mxu0 0
    %177 = vmatpush.bf16.msra.mxu0 0
    %178 = vmatpush.bf16.msra.mxu0 %v140
    %179 = vmatmul.bf16.gmra.mxu0 %v147
    %v180 = vpop.f32.mrf.mxu0
    %v181 = vadd.f32 0.0, %v180
    %v182 = vpop.f32.mrf.mxu0
    %v183 = vadd.f32 0.0, %v182
    %184 = vmatmul.bf16.gmra.mxu0 %v150
    %v185 = vpop.f32.mrf.mxu0
    %v186 = vadd.f32 0.0, %v185
    %v187 = vpop.f32.mrf.mxu0
    %v188 = vadd.f32 0.0, %v187
    %189 = vdwg.mxu0
    %190 = vmatpush.bf16.msra.mxu0 0
    %191 = vmatpush.bf16.msra.mxu0 0
    %192 = vmatpush.bf16.msra.mxu0 0
    %193 = vmatpush.bf16.msra.mxu0 0
    %194 = vmatpush.bf16.msra.mxu0 0
    %195 = vmatpush.bf16.msra.mxu0 0
    %196 = vmatpush.bf16.msra.mxu0 0
    %197 = vmatpush.bf16.msra.mxu0 %v141
    %198 = vmatmul.bf16.gmra.mxu0 %v147
    %v199 = vpop.f32.mrf.mxu0
    %v200 = vadd.f32 0.0, %v199
    %v201 = vpop.f32.mrf.mxu0
    %v202 = vadd.f32 0.0, %v201
    %203 = vmatmul.bf16.gmra.mxu0 %v150
    %v204 = vpop.f32.mrf.mxu0
    %v205 = vadd.f32 0.0, %v204
    %v206 = vpop.f32.mrf.mxu0
    %v207 = vadd.f32 0.0, %v206
    %208 = vdwg.mxu0
    %v213 = vunpack.c.l.b16 %v111
    %v214 = vunpack.c.h.b16 %v111
    %v215 = vunpack.c.l.b16 %v112
    %v216 = vunpack.c.l.b16 %v113
    %v217 = vunpack.c.h.b16 %v113
    %v218 = vunpack.c.l.b16 %v114
    %v219 = vpack.c.b16 %v216, %v213
    %v220 = vpack.c.b16 %v217, %v214
    %v221 = vpack.c.b16 %v218, %v215
    %v226 = vsel %vm145, %v115, 0
    %v229 = vsel %vm145, %v116, 0
    %231 = vmatpush.bf16.msra.mxu0 0
    %232 = vmatpush.bf16.msra.mxu0 0
    %233 = vmatpush.bf16.msra.mxu0 0
    %234 = vmatpush.bf16.msra.mxu0 0
    %235 = vmatpush.bf16.msra.mxu0 0
    %236 = vmatpush.bf16.msra.mxu0 0
    %237 = vmatpush.bf16.msra.mxu0 0
    %238 = vmatpush.bf16.msra.mxu0 %v219
    %239 = vmatmul.bf16.gmra.mxu0 %v226
    %v240 = vpop.f32.mrf.mxu0
    %v241 = vadd.f32 %v162, %v240
    %v242 = vpop.f32.mrf.mxu0
    %v243 = vadd.f32 %v164, %v242
    %244 = vmatmul.bf16.gmra.mxu0 %v229
    %v245 = vpop.f32.mrf.mxu0
    %v246 = vadd.f32 %v167, %v245
    %v247 = vpop.f32.mrf.mxu0
    %v248 = vadd.f32 %v169, %v247
    %249 = vdwg.mxu0
    %250 = vmatpush.bf16.msra.mxu0 0
    %251 = vmatpush.bf16.msra.mxu0 0
    %252 = vmatpush.bf16.msra.mxu0 0
    %253 = vmatpush.bf16.msra.mxu0 0
    %254 = vmatpush.bf16.msra.mxu0 0
    %255 = vmatpush.bf16.msra.mxu0 0
    %256 = vmatpush.bf16.msra.mxu0 0
    %257 = vmatpush.bf16.msra.mxu0 %v220
    %258 = vmatmul.bf16.gmra.mxu0 %v226
    %v259 = vpop.f32.mrf.mxu0
    %v260 = vadd.f32 %v181, %v259
    %v261 = vpop.f32.mrf.mxu0
    %v262 = vadd.f32 %v183, %v261
    %263 = vmatmul.bf16.gmra.mxu0 %v229
    %v264 = vpop.f32.mrf.mxu0
    %v265 = vadd.f32 %v186, %v264
    %v266 = vpop.f32.mrf.mxu0
    %v267 = vadd.f32 %v188, %v266
    %268 = vdwg.mxu0
    %269 = vmatpush.bf16.msra.mxu0 0
    %270 = vmatpush.bf16.msra.mxu0 0
    %271 = vmatpush.bf16.msra.mxu0 0
    %272 = vmatpush.bf16.msra.mxu0 0
    %273 = vmatpush.bf16.msra.mxu0 0
    %274 = vmatpush.bf16.msra.mxu0 0
    %275 = vmatpush.bf16.msra.mxu0 0
    %276 = vmatpush.bf16.msra.mxu0 %v221
    %277 = vmatmul.bf16.gmra.mxu0 %v226
    %v278 = vpop.f32.mrf.mxu0
    %v279 = vadd.f32 %v200, %v278
    %v280 = vpop.f32.mrf.mxu0
    %v281 = vadd.f32 %v202, %v280
    %282 = vmatmul.bf16.gmra.mxu0 %v229
    %v283 = vpop.f32.mrf.mxu0
    %v284 = vadd.f32 %v205, %v283
    %v285 = vpop.f32.mrf.mxu0
    %v286 = vadd.f32 %v207, %v285
    %287 = vdwg.mxu0
    %s288 = scalar_lea.vmem [#allocation2], 32
    %v289 = vld [vmem:[%s288] sm:$0xff]
    %v290 = vld [vmem:[%s288 + $0x8] sm:$0xff]
    %s291 = scalar_lea.vmem [#allocation2], 80
    %v292 = vld [vmem:[%s291] sm:$0xff]
    %v293 = vld [vmem:[%s291 + $0x8] sm:$0xff]
    %v294 = vld [vmem:[#allocation5 + $0x30] sm:$0xff]
    %v295 = vld [vmem:[#allocation5 + $0x38] sm:$0xf]
    %v296 = vld [vmem:[#allocation5 + $0x3c] sm:$0xff]
    %v297 = vld [vmem:[#allocation5 + $0x44] sm:$0xf]
    %v298 = vpack.c.bf16 %v290, %v289
    %v299 = vpack.c.bf16 %v293, %v292
    %v304 = vunpack.c.l.b16 %v294
    %v305 = vunpack.c.h.b16 %v294
    %v306 = vunpack.c.l.b16 %v295
    %v307 = vunpack.c.l.b16 %v296
    %v308 = vunpack.c.h.b16 %v296
    %v309 = vunpack.c.l.b16 %v297
    %v310 = vpack.c.b16 %v307, %v304
    %v311 = vpack.c.b16 %v308, %v305
    %v312 = vpack.c.b16 %v309, %v306
    %v317 = vsel %vm145, %v298, 0
    %v320 = vsel %vm145, %v299, 0
    %322 = vmatpush.bf16.msra.mxu0 0
    %323 = vmatpush.bf16.msra.mxu0 0
    %324 = vmatpush.bf16.msra.mxu0 0
    %325 = vmatpush.bf16.msra.mxu0 0
    %326 = vmatpush.bf16.msra.mxu0 0
    %327 = vmatpush.bf16.msra.mxu0 0
    %328 = vmatpush.bf16.msra.mxu0 0
    %329 = vmatpush.bf16.msra.mxu0 %v310
    %330 = vmatmul.bf16.gmra.mxu0 %v317
    %v331 = vpop.f32.mrf.mxu0
    %v332 = vadd.f32 0.0, %v331
    %v333 = vpop.f32.mrf.mxu0
    %v334 = vadd.f32 0.0, %v333
    %335 = vmatmul.bf16.gmra.mxu0 %v320
    %v336 = vpop.f32.mrf.mxu0
    %v337 = vadd.f32 0.0, %v336
    %v338 = vpop.f32.mrf.mxu0
    %v339 = vadd.f32 0.0, %v338
    %340 = vdwg.mxu0
    %341 = vmatpush.bf16.msra.mxu0 0
    %342 = vmatpush.bf16.msra.mxu0 0
    %343 = vmatpush.bf16.msra.mxu0 0
    %344 = vmatpush.bf16.msra.mxu0 0
    %345 = vmatpush.bf16.msra.mxu0 0
    %346 = vmatpush.bf16.msra.mxu0 0
    %347 = vmatpush.bf16.msra.mxu0 0
    %348 = vmatpush.bf16.msra.mxu0 %v311
    %349 = vmatmul.bf16.gmra.mxu0 %v317
    %v350 = vpop.f32.mrf.mxu0
    %v351 = vadd.f32 0.0, %v350
    %v352 = vpop.f32.mrf.mxu0
    %v353 = vadd.f32 0.0, %v352
    %354 = vmatmul.bf16.gmra.mxu0 %v320
    %v355 = vpop.f32.mrf.mxu0
    %v356 = vadd.f32 0.0, %v355
    %v357 = vpop.f32.mrf.mxu0
    %v358 = vadd.f32 0.0, %v357
    %359 = vdwg.mxu0
    %360 = vmatpush.bf16.msra.mxu0 0
    %361 = vmatpush.bf16.msra.mxu0 0
    %362 = vmatpush.bf16.msra.mxu0 0
    %363 = vmatpush.bf16.msra.mxu0 0
    %364 = vmatpush.bf16.msra.mxu0 0
    %365 = vmatpush.bf16.msra.mxu0 0
    %366 = vmatpush.bf16.msra.mxu0 0
    %367 = vmatpush.bf16.msra.mxu0 %v312
    %368 = vmatmul.bf16.gmra.mxu0 %v317
    %v369 = vpop.f32.mrf.mxu0
    %v370 = vadd.f32 0.0, %v369
    %v371 = vpop.f32.mrf.mxu0
    %v372 = vadd.f32 0.0, %v371
    %373 = vmatmul.bf16.gmra.mxu0 %v320
    %v374 = vpop.f32.mrf.mxu0
    %v375 = vadd.f32 0.0, %v374
    %v376 = vpop.f32.mrf.mxu0
    %v377 = vadd.f32 0.0, %v376
    %378 = vdwg.mxu0
    %v379 = vadd.f32 %v241, %v332
    %v380 = vadd.f32 %v260, %v351
    %v381 = vadd.f32 %v279, %v370
    %v382 = vadd.f32 %v243, %v334
    %v383 = vadd.f32 %v262, %v353
    %v384 = vadd.f32 %v281, %v372
    %v385 = vadd.f32 %v246, %v337
    %v386 = vadd.f32 %v265, %v356
    %v387 = vadd.f32 %v284, %v375
    %v388 = vadd.f32 %v248, %v339
    %v389 = vadd.f32 %v267, %v358
    %v390 = vadd.f32 %v286, %v377
    %v391 = vperm.slane %v103, 0
    %vm392 = vcmask 785408
    %v394 = vsel %vm392, %v100, 0
    %v397 = vsel %vm392, %v101, 0
    %399 = vmatpush.msra.mxu0 0.0
    %400 = vmatpush.msra.mxu0 0.0
    %401 = vmatpush.msra.mxu0 0.0
    %402 = vmatpush.msra.mxu0 0.0
    %403 = vmatpush.msra.mxu0 %v390
    %404 = vmatpush.msra.mxu0 %v387
    %405 = vmatpush.msra.mxu0 %v384
    %406 = vmatpush.msra.mxu0 %v381
    %407 = vmatpush.msra.mxu0 %v389
    %408 = vmatpush.msra.mxu0 %v386
    %409 = vmatpush.msra.mxu0 %v383
    %410 = vmatpush.msra.mxu0 %v380
    %411 = vmatpush.msra.mxu0 %v388
    %412 = vmatpush.msra.mxu0 %v385
    %413 = vmatpush.msra.mxu0 %v382
    %414 = vmatpush.msra.mxu0 %v379
    %415 = vmatmul.f32.gmra.mxu0 %v394
    %v416 = vpop.f32.mrf.mxu0
    %v417 = vadd.f32 %v391, %v416
    %418 = vmatmul.f32.gmra.mxu0 %v397
    %v419 = vpop.f32.mrf.mxu0
    %v420 = vadd.f32 %v391, %v419
    %421 = vdwg.mxu0
    %v422 = vpack.c.bf16 %v420, %v417
    %v423 = vld [vmem:[#allocation7] sm:$0xff]
    %v424 = vld [vmem:[#allocation7 + $0x8] sm:$0xf]
    %v425 = vld [vmem:[#allocation7 + $0xc] sm:$0xff]
    %v426 = vld [vmem:[#allocation7 + $0x14] sm:$0xf]
    %v427 = vld [vmem:[#allocation7 + $0x18] sm:$0xff]
    %v428 = vld [vmem:[#allocation7 + $0x20] sm:$0xf]
    %v429 = vld [vmem:[#allocation7 + $0x24] sm:$0xff]
    %v430 = vld [vmem:[#allocation7 + $0x2c] sm:$0xf]
    %v431 = vld [vmem:[#allocation7 + $0x30] sm:$0xff]
    %v432 = vld [vmem:[#allocation7 + $0x38] sm:$0xf]
    %v433 = vld [vmem:[#allocation7 + $0x3c] sm:$0xff]
    %v434 = vld [vmem:[#allocation7 + $0x44] sm:$0xf]
    %v435 = vld [vmem:[#allocation7 + $0x48] sm:$0xff]
    %v436 = vld [vmem:[#allocation7 + $0x50] sm:$0xf]
    %v437 = vld [vmem:[#allocation7 + $0x54] sm:$0xff]
    %v438 = vld [vmem:[#allocation7 + $0x5c] sm:$0xf]
    %v439 = vld [vmem:[#allocation7 + $0x60] sm:$0xff]
    %v440 = vld [vmem:[#allocation7 + $0x68] sm:$0xf]
    %v441 = vld [vmem:[#allocation7 + $0x6c] sm:$0xff]
    %v442 = vld [vmem:[#allocation7 + $0x74] sm:$0xf]
    %v443 = vld [vmem:[#allocation7 + $0x78] sm:$0xff]
    %v444 = vld [vmem:[#allocation7 + $0x80] sm:$0xf]
    %v445 = vld [vmem:[#allocation7 + $0x84] sm:$0xff]
    %v446 = vld [vmem:[#allocation7 + $0x8c] sm:$0xf]
    %v447 = vld [vmem:[#allocation7 + $0x90] sm:$0xff]
    %v448 = vld [vmem:[#allocation7 + $0x98] sm:$0xf]
    %v449 = vld [vmem:[#allocation7 + $0x9c] sm:$0xff]
    %v450 = vld [vmem:[#allocation7 + $0xa4] sm:$0xf]
    %v451 = vld [vmem:[#allocation7 + $0xa8] sm:$0xff]
    %v452 = vld [vmem:[#allocation7 + $0xb0] sm:$0xf]
    %v453 = vld [vmem:[#allocation7 + $0xb4] sm:$0xff]
    %v454 = vld [vmem:[#allocation7 + $0xbc] sm:$0xf]
    %v487 = vunpack.c.l.b16 %v423
    %v488 = vunpack.c.h.b16 %v423
    %v489 = vunpack.c.l.b16 %v424
    %v490 = vunpack.c.l.b16 %v425
    %v491 = vunpack.c.h.b16 %v425
    %v492 = vunpack.c.l.b16 %v426
    %v493 = vunpack.c.l.b16 %v427
    %v494 = vunpack.c.h.b16 %v427
    %v495 = vunpack.c.l.b16 %v428
    %v496 = vunpack.c.l.b16 %v429
    %v497 = vunpack.c.h.b16 %v429
    %v498 = vunpack.c.l.b16 %v430
    %v499 = vunpack.c.l.b16 %v431
    %v500 = vunpack.c.h.b16 %v431
    %v501 = vunpack.c.l.b16 %v432
    %v502 = vunpack.c.l.b16 %v433
    %v503 = vunpack.c.h.b16 %v433
    %v504 = vunpack.c.l.b16 %v434
    %v505 = vunpack.c.l.b16 %v435
    %v506 = vunpack.c.h.b16 %v435
    %v507 = vunpack.c.l.b16 %v436
    %v508 = vunpack.c.l.b16 %v437
    %v509 = vunpack.c.h.b16 %v437
    %v510 = vunpack.c.l.b16 %v438
    %v511 = vunpack.c.l.b16 %v439
    %v512 = vunpack.c.h.b16 %v439
    %v513 = vunpack.c.l.b16 %v440
    %v514 = vunpack.c.l.b16 %v441
    %v515 = vunpack.c.h.b16 %v441
    %v516 = vunpack.c.l.b16 %v442
    %v517 = vunpack.c.l.b16 %v443
    %v518 = vunpack.c.h.b16 %v443
    %v519 = vunpack.c.l.b16 %v444
    %v520 = vunpack.c.l.b16 %v445
    %v521 = vunpack.c.h.b16 %v445
    %v522 = vunpack.c.l.b16 %v446
    %v523 = vunpack.c.l.b16 %v447
    %v524 = vunpack.c.h.b16 %v447
    %v525 = vunpack.c.l.b16 %v448
    %v526 = vunpack.c.l.b16 %v449
    %v527 = vunpack.c.h.b16 %v449
    %v528 = vunpack.c.l.b16 %v450
    %v529 = vunpack.c.l.b16 %v451
    %v530 = vunpack.c.h.b16 %v451
    %v531 = vunpack.c.l.b16 %v452
    %v532 = vunpack.c.l.b16 %v453
    %v533 = vunpack.c.h.b16 %v453
    %v534 = vunpack.c.l.b16 %v454
    %v535 = vpack.c.b16 %v490, %v487
    %v536 = vpack.c.b16 %v491, %v488
    %v537 = vpack.c.b16 %v492, %v489
    %v538 = vpack.c.b16 %v496, %v493
    %v539 = vpack.c.b16 %v497, %v494
    %v540 = vpack.c.b16 %v498, %v495
    %v541 = vpack.c.b16 %v502, %v499
    %v542 = vpack.c.b16 %v503, %v500
    %v543 = vpack.c.b16 %v504, %v501
    %v544 = vpack.c.b16 %v508, %v505
    %v545 = vpack.c.b16 %v509, %v506
    %v546 = vpack.c.b16 %v510, %v507
    %v547 = vpack.c.b16 %v514, %v511
    %v548 = vpack.c.b16 %v515, %v512
    %v549 = vpack.c.b16 %v516, %v513
    %v550 = vpack.c.b16 %v520, %v517
    %v551 = vpack.c.b16 %v521, %v518
    %v552 = vpack.c.b16 %v522, %v519
    %v553 = vpack.c.b16 %v526, %v523
    %v554 = vpack.c.b16 %v527, %v524
    %v555 = vpack.c.b16 %v528, %v525
    %v556 = vpack.c.b16 %v532, %v529
    %v557 = vpack.c.b16 %v533, %v530
    %v558 = vpack.c.b16 %v534, %v531
    %583 = vmatpush.bf16.msra.mxu0 %v556
    %584 = vmatpush.bf16.msra.mxu0 %v553
    %585 = vmatpush.bf16.msra.mxu0 %v550
    %586 = vmatpush.bf16.msra.mxu0 %v547
    %587 = vmatpush.bf16.msra.mxu0 %v544
    %588 = vmatpush.bf16.msra.mxu0 %v541
    %589 = vmatpush.bf16.msra.mxu0 %v538
    %590 = vmatpush.bf16.msra.mxu0 %v535
    %591 = vmatmul.bf16.gmra.mxu0 %v422
    %v592 = vpop.f32.mrf.mxu0
    %v593 = vadd.f32 0.0, %v592
    %v594 = vpop.f32.mrf.mxu0
    %v595 = vadd.f32 0.0, %v594
    %596 = vdwg.mxu0
    %597 = vmatpush.bf16.msra.mxu0 %v557
    %598 = vmatpush.bf16.msra.mxu0 %v554
    %599 = vmatpush.bf16.msra.mxu0 %v551
    %600 = vmatpush.bf16.msra.mxu0 %v548
    %601 = vmatpush.bf16.msra.mxu0 %v545
    %602 = vmatpush.bf16.msra.mxu0 %v542
    %603 = vmatpush.bf16.msra.mxu0 %v539
    %604 = vmatpush.bf16.msra.mxu0 %v536
    %605 = vmatmul.bf16.gmra.mxu0 %v422
    %v606 = vpop.f32.mrf.mxu0
    %v607 = vadd.f32 0.0, %v606
    %v608 = vpop.f32.mrf.mxu0
    %v609 = vadd.f32 0.0, %v608
    %610 = vdwg.mxu0
    %611 = vmatpush.bf16.msra.mxu0 %v558
    %612 = vmatpush.bf16.msra.mxu0 %v555
    %613 = vmatpush.bf16.msra.mxu0 %v552
    %614 = vmatpush.bf16.msra.mxu0 %v549
    %615 = vmatpush.bf16.msra.mxu0 %v546
    %616 = vmatpush.bf16.msra.mxu0 %v543
    %617 = vmatpush.bf16.msra.mxu0 %v540
    %618 = vmatpush.bf16.msra.mxu0 %v537
    %619 = vmatmul.bf16.gmra.mxu0 %v422
    %v620 = vpop.f32.mrf.mxu0
    %v621 = vadd.f32 0.0, %v620
    %v622 = vpop.f32.mrf.mxu0
    %v623 = vadd.f32 0.0, %v622
    %624 = vdwg.mxu0
    %v625 = vperm.slane %v104, 0
    %vm626 = vcmask 392192
    %v628 = vsel %vm626, %v102, 0
    %630 = vmatpush.msra.mxu0 0.0
    %631 = vmatpush.msra.mxu0 0.0
    %632 = vmatpush.msra.mxu0 0.0
    %633 = vmatpush.msra.mxu0 0.0
    %634 = vmatpush.msra.mxu0 0.0
    %635 = vmatpush.msra.mxu0 0.0
    %636 = vmatpush.msra.mxu0 0.0
    %637 = vmatpush.msra.mxu0 0.0
    %638 = vmatpush.msra.mxu0 0.0
    %639 = vmatpush.msra.mxu0 0.0
    %640 = vmatpush.msra.mxu0 %v623
    %641 = vmatpush.msra.mxu0 %v621
    %642 = vmatpush.msra.mxu0 %v609
    %643 = vmatpush.msra.mxu0 %v607
    %644 = vmatpush.msra.mxu0 %v595
    %645 = vmatpush.msra.mxu0 %v593
    %646 = vmatmul.f32.gmra.mxu0 %v628
    %v647 = vpop.f32.mrf.mxu0
    %v648 = vadd.f32 %v625, %v647
    %649 = vdwg.mxu0
    %v651 = vunpack.c.l.s4 1935823168
    %v652 = vunpack.c.0.s8 %v651
    %v653 = vperm.slane %v648, %v652
    %655 = vst [vmem:[#allocation1] ss:$4 sm:$0xff] %v653
    %v656 = vld.sshfl [vmem:[#allocation1] sm:$0xff pattern:$0x73625140]
    %v657 = vld.sshfl [vmem:[#allocation1 + $0x8] sm:$0xff pattern:$0x73625140]
    %v658 = vld.sshfl [vmem:[#allocation1 + $0x10] sm:$0xff pattern:$0x73625140]
    %v659 = vld.sshfl [vmem:[#allocation1 + $0x18] sm:$0xff pattern:$0x73625140]
    %v664 = vpack.c.bf16 %v656, %v656
    %v665 = vpack.c.bf16 %v657, %v657
    %v666 = vpack.c.bf16 %v658, %v658
    %v667 = vpack.c.bf16 %v659, %v659
    %v668 = vld [vmem:[#allocation8] sm:$0xf]
    %v669 = vld [vmem:[#allocation8 + $0x4] sm:$0xf]
    %v670 = vld [vmem:[#allocation8 + $0x8] sm:$0xf]
    %v671 = vld [vmem:[#allocation8 + $0xc] sm:$0xf]
    %v672 = vld [vmem:[#allocation8 + $0x10] sm:$0xf]
    %v673 = vld [vmem:[#allocation8 + $0x14] sm:$0xf]
    %v674 = vld [vmem:[#allocation8 + $0x18] sm:$0xf]
    %v675 = vld [vmem:[#allocation8 + $0x1c] sm:$0xf]
    %v676 = vld [vmem:[#allocation8 + $0x20] sm:$0xf]
    %v677 = vld [vmem:[#allocation8 + $0x24] sm:$0xf]
    %v678 = vld [vmem:[#allocation8 + $0x28] sm:$0xf]
    %v679 = vld [vmem:[#allocation8 + $0x2c] sm:$0xf]
    %v680 = vld [vmem:[#allocation8 + $0x30] sm:$0xf]
    %v681 = vld [vmem:[#allocation8 + $0x34] sm:$0xf]
    %v682 = vld [vmem:[#allocation8 + $0x38] sm:$0xf]
    %v683 = vld [vmem:[#allocation8 + $0x3c] sm:$0xf]
    %v684 = vld [vmem:[#allocation8 + $0x40] sm:$0xf]
    %v685 = vld [vmem:[#allocation8 + $0x44] sm:$0xf]
    %v686 = vld [vmem:[#allocation8 + $0x48] sm:$0xf]
    %v687 = vld [vmem:[#allocation8 + $0x4c] sm:$0xf]
    %v688 = vld [vmem:[#allocation8 + $0x50] sm:$0xf]
    %v689 = vld [vmem:[#allocation8 + $0x54] sm:$0xf]
    %v690 = vld [vmem:[#allocation8 + $0x58] sm:$0xf]
    %v691 = vld [vmem:[#allocation8 + $0x5c] sm:$0xf]
    %v692 = vld [vmem:[#allocation8 + $0x60] sm:$0xf]
    %v693 = vld [vmem:[#allocation8 + $0x64] sm:$0xf]
    %v694 = vld [vmem:[#allocation8 + $0x68] sm:$0xf]
    %v695 = vld [vmem:[#allocation8 + $0x6c] sm:$0xf]
    %v696 = vld [vmem:[#allocation8 + $0x70] sm:$0xf]
    %v697 = vld [vmem:[#allocation8 + $0x74] sm:$0xf]
    %v698 = vld [vmem:[#allocation8 + $0x78] sm:$0xf]
    %v699 = vld [vmem:[#allocation8 + $0x7c] sm:$0xf]
    %v700 = vld [vmem:[#allocation8 + $0x80] sm:$0xf]
    %v701 = vld [vmem:[#allocation8 + $0x84] sm:$0xf]
    %v702 = vld [vmem:[#allocation8 + $0x88] sm:$0xf]
    %v703 = vld [vmem:[#allocation8 + $0x8c] sm:$0xf]
    %v704 = vld [vmem:[#allocation8 + $0x90] sm:$0xf]
    %v705 = vld [vmem:[#allocation8 + $0x94] sm:$0xf]
    %v706 = vld [vmem:[#allocation8 + $0x98] sm:$0xf]
    %v707 = vld [vmem:[#allocation8 + $0x9c] sm:$0xf]
    %v708 = vld [vmem:[#allocation8 + $0xa0] sm:$0xf]
    %v709 = vld [vmem:[#allocation8 + $0xa4] sm:$0xf]
    %v710 = vld [vmem:[#allocation8 + $0xa8] sm:$0xf]
    %v711 = vld [vmem:[#allocation8 + $0xac] sm:$0xf]
    %v712 = vld [vmem:[#allocation8 + $0xb0] sm:$0xf]
    %v713 = vld [vmem:[#allocation8 + $0xb4] sm:$0xf]
    %v714 = vld [vmem:[#allocation8 + $0xb8] sm:$0xf]
    %v715 = vld [vmem:[#allocation8 + $0xbc] sm:$0xf]
    %v716 = vld [vmem:[#allocation8 + $0xc0] sm:$0xf]
    %v717 = vld [vmem:[#allocation8 + $0xc4] sm:$0xf]
    %v718 = vld [vmem:[#allocation8 + $0xc8] sm:$0xf]
    %v719 = vld [vmem:[#allocation8 + $0xcc] sm:$0xf]
    %v720 = vld [vmem:[#allocation8 + $0xd0] sm:$0xf]
    %v721 = vld [vmem:[#allocation8 + $0xd4] sm:$0xf]
    %v722 = vld [vmem:[#allocation8 + $0xd8] sm:$0xf]
    %v723 = vld [vmem:[#allocation8 + $0xdc] sm:$0xf]
    %v724 = vld [vmem:[#allocation8 + $0xe0] sm:$0xf]
    %v725 = vld [vmem:[#allocation8 + $0xe4] sm:$0xf]
    %v726 = vld [vmem:[#allocation8 + $0xe8] sm:$0xf]
    %v727 = vld [vmem:[#allocation8 + $0xec] sm:$0xf]
    %v728 = vld [vmem:[#allocation8 + $0xf0] sm:$0xf]
    %v729 = vld [vmem:[#allocation8 + $0xf4] sm:$0xf]
    %v730 = vld [vmem:[#allocation8 + $0xf8] sm:$0xf]
    %v731 = vld [vmem:[#allocation8 + $0xfc] sm:$0xf]
    %v732 = vperm.slane %v105, 0
    %v797 = vunpack.c.l.b16 %v668
    %v798 = vunpack.c.l.b16 %v669
    %v799 = vunpack.c.l.b16 %v670
    %v800 = vunpack.c.l.b16 %v671
    %v801 = vunpack.c.l.b16 %v672
    %v802 = vunpack.c.l.b16 %v673
    %v803 = vunpack.c.l.b16 %v674
    %v804 = vunpack.c.l.b16 %v675
    %v805 = vunpack.c.l.b16 %v676
    %v806 = vunpack.c.l.b16 %v677
    %v807 = vunpack.c.l.b16 %v678
    %v808 = vunpack.c.l.b16 %v679
    %v809 = vunpack.c.l.b16 %v680
    %v810 = vunpack.c.l.b16 %v681
    %v811 = vunpack.c.l.b16 %v682
    %v812 = vunpack.c.l.b16 %v683
    %v813 = vunpack.c.l.b16 %v684
    %v814 = vunpack.c.l.b16 %v685
    %v815 = vunpack.c.l.b16 %v686
    %v816 = vunpack.c.l.b16 %v687
    %v817 = vunpack.c.l.b16 %v688
    %v818 = vunpack.c.l.b16 %v689
    %v819 = vunpack.c.l.b16 %v690
    %v820 = vunpack.c.l.b16 %v691
    %v821 = vunpack.c.l.b16 %v692
    %v822 = vunpack.c.l.b16 %v693
    %v823 = vunpack.c.l.b16 %v694
    %v824 = vunpack.c.l.b16 %v695
    %v825 = vunpack.c.l.b16 %v696
    %v826 = vunpack.c.l.b16 %v697
    %v827 = vunpack.c.l.b16 %v698
    %v828 = vunpack.c.l.b16 %v699
    %v829 = vunpack.c.l.b16 %v700
    %v830 = vunpack.c.l.b16 %v701
    %v831 = vunpack.c.l.b16 %v702
    %v832 = vunpack.c.l.b16 %v703
    %v833 = vunpack.c.l.b16 %v704
    %v834 = vunpack.c.l.b16 %v705
    %v835 = vunpack.c.l.b16 %v706
    %v836 = vunpack.c.l.b16 %v707
    %v837 = vunpack.c.l.b16 %v708
    %v838 = vunpack.c.l.b16 %v709
    %v839 = vunpack.c.l.b16 %v710
    %v840 = vunpack.c.l.b16 %v711
    %v841 = vunpack.c.l.b16 %v712
    %v842 = vunpack.c.l.b16 %v713
    %v843 = vunpack.c.l.b16 %v714
    %v844 = vunpack.c.l.b16 %v715
    %v845 = vunpack.c.l.b16 %v716
    %v846 = vunpack.c.l.b16 %v717
    %v847 = vunpack.c.l.b16 %v718
    %v848 = vunpack.c.l.b16 %v719
    %v849 = vunpack.c.l.b16 %v720
    %v850 = vunpack.c.l.b16 %v721
    %v851 = vunpack.c.l.b16 %v722
    %v852 = vunpack.c.l.b16 %v723
    %v853 = vunpack.c.l.b16 %v724
    %v854 = vunpack.c.l.b16 %v725
    %v855 = vunpack.c.l.b16 %v726
    %v856 = vunpack.c.l.b16 %v727
    %v857 = vunpack.c.l.b16 %v728
    %v858 = vunpack.c.l.b16 %v729
    %v859 = vunpack.c.l.b16 %v730
    %v860 = vunpack.c.l.b16 %v731
    %v861 = vpack.c.b16 %v798, %v797
    %v862 = vpack.c.b16 %v800, %v799
    %v863 = vpack.c.b16 %v802, %v801
    %v864 = vpack.c.b16 %v804, %v803
    %v865 = vpack.c.b16 %v806, %v805
    %v866 = vpack.c.b16 %v808, %v807
    %v867 = vpack.c.b16 %v810, %v809
    %v868 = vpack.c.b16 %v812, %v811
    %v869 = vpack.c.b16 %v814, %v813
    %v870 = vpack.c.b16 %v816, %v815
    %v871 = vpack.c.b16 %v818, %v817
    %v872 = vpack.c.b16 %v820, %v819
    %v873 = vpack.c.b16 %v822, %v821
    %v874 = vpack.c.b16 %v824, %v823
    %v875 = vpack.c.b16 %v826, %v825
    %v876 = vpack.c.b16 %v828, %v827
    %v877 = vpack.c.b16 %v830, %v829
    %v878 = vpack.c.b16 %v832, %v831
    %v879 = vpack.c.b16 %v834, %v833
    %v880 = vpack.c.b16 %v836, %v835
    %v881 = vpack.c.b16 %v838, %v837
    %v882 = vpack.c.b16 %v840, %v839
    %v883 = vpack.c.b16 %v842, %v841
    %v884 = vpack.c.b16 %v844, %v843
    %v885 = vpack.c.b16 %v846, %v845
    %v886 = vpack.c.b16 %v848, %v847
    %v887 = vpack.c.b16 %v850, %v849
    %v888 = vpack.c.b16 %v852, %v851
    %v889 = vpack.c.b16 %v854, %v853
    %v890 = vpack.c.b16 %v856, %v855
    %v891 = vpack.c.b16 %v858, %v857
    %v892 = vpack.c.b16 %v860, %v859
    %925 = vmatpush.bf16.msra.mxu0 %v868
    %926 = vmatpush.bf16.msra.mxu0 %v867
    %927 = vmatpush.bf16.msra.mxu0 %v866
    %928 = vmatpush.bf16.msra.mxu0 %v865
    %929 = vmatpush.bf16.msra.mxu0 %v864
    %930 = vmatpush.bf16.msra.mxu0 %v863
    %931 = vmatpush.bf16.msra.mxu0 %v862
    %932 = vmatpush.bf16.msra.mxu0 %v861
    %933 = vmatmul.bf16.gmra.mxu0 %v664
    %v934 = vpop.f32.mrf.mxu0
    %v935 = vadd.f32 %v732, %v934
    %v936 = vpop.f32.mrf.mxu0
    %937 = vdwg.mxu0
    %938 = vmatpush.bf16.msra.mxu0 %v876
    %939 = vmatpush.bf16.msra.mxu0 %v875
    %940 = vmatpush.bf16.msra.mxu0 %v874
    %941 = vmatpush.bf16.msra.mxu0 %v873
    %942 = vmatpush.bf16.msra.mxu0 %v872
    %943 = vmatpush.bf16.msra.mxu0 %v871
    %944 = vmatpush.bf16.msra.mxu0 %v870
    %945 = vmatpush.bf16.msra.mxu0 %v869
    %946 = vmatmul.bf16.gmra.mxu0 %v665
    %v947 = vpop.f32.mrf.mxu0
    %v948 = vadd.f32 %v935, %v947
    %v949 = vpop.f32.mrf.mxu0
    %950 = vdwg.mxu0
    %951 = vmatpush.bf16.msra.mxu0 %v884
    %952 = vmatpush.bf16.msra.mxu0 %v883
    %953 = vmatpush.bf16.msra.mxu0 %v882
    %954 = vmatpush.bf16.msra.mxu0 %v881
    %955 = vmatpush.bf16.msra.mxu0 %v880
    %956 = vmatpush.bf16.msra.mxu0 %v879
    %957 = vmatpush.bf16.msra.mxu0 %v878
    %958 = vmatpush.bf16.msra.mxu0 %v877
    %959 = vmatmul.bf16.gmra.mxu0 %v666
    %v960 = vpop.f32.mrf.mxu0
    %v961 = vadd.f32 %v948, %v960
    %v962 = vpop.f32.mrf.mxu0
    %963 = vdwg.mxu0
    %964 = vmatpush.bf16.msra.mxu0 %v892
    %965 = vmatpush.bf16.msra.mxu0 %v891
    %966 = vmatpush.bf16.msra.mxu0 %v890
    %967 = vmatpush.bf16.msra.mxu0 %v889
    %968 = vmatpush.bf16.msra.mxu0 %v888
    %969 = vmatpush.bf16.msra.mxu0 %v887
    %970 = vmatpush.bf16.msra.mxu0 %v886
    %971 = vmatpush.bf16.msra.mxu0 %v885
    %972 = vmatmul.bf16.gmra.mxu0 %v667
    %v973 = vpop.f32.mrf.mxu0
    %v974 = vadd.f32 %v961, %v973
    %v975 = vpop.f32.mrf.mxu0
    %976 = vdwg.mxu0
    %977 = vst [vmem:[#allocation11] sm:$0x3] %v974
    // Predicated region
    $region42: #{model_forward.1} parent=1 // pred_check
      _
    $region43: #{model_forward.1} parent=1 // pred_check_branch
      %979 = sbr.rel (0) target = $region45
    $region44: #{model_forward.1} parent=1 // pred_region
      %981 = vsyncadd [#allocation4], 0
      %s983 = sshll.u32 [#allocation11], 4
      %s984 = int_to_ptr.vmem [resolvable:$true] %s983
      %s985 = sshll.u32 %s5, 4
      %s986 = int_to_ptr.hbm [resolvable:$true] %s985
      %988 = dma.vmem_to_hbm [thread:$0]  %s984, 32, %s986, [#allocation4]
    $region45: #{model_forward.1} parent=1 // pred_fallthru
      _
    // Predicated region
    $region46: #{model_forward.1} parent=1 // pred_check
      _
    $region47: #{model_forward.1} parent=1 // pred_check_branch
      %990 = sbr.rel (0) target = $region49
    $region48: #{model_forward.1} parent=1 // pred_region
      %992 = dma.done [#allocation4], 32
    $region49: #{model_forward.1} parent=1 // pred_fallthru
      _
    %993 = vsyncpa [#allocation3], 1
    %994 = vsyncpa [#allocation6], 1
    %995 = vsyncpa [#allocation9], 1
    %996 = vsyncpa [#allocation4], 1

</llo_original>
